<compile_context>
chip_gen: v7x
topology: tpu7x:2x2x1
jax: 0.10.0
libtpu: 0.0.40
codegen_flags: <defaults>
</compile_context>

<pallas_src>
import functools

import jax
import jax.numpy as jnp
from jax.experimental import pallas as pl
from jax.experimental.pallas import tpu as pltpu


def _round_up(n, m):
    return ((n + m - 1) // m) * m


def _bert_classifier_kernel(tok_ref,    # VMEM (bB, L)  int32
                            seg_ref,    # VMEM (bB, L)  int32
                            vlen_ref,   # VMEM (bB, 1)  int32
                            emb_ref,    # VMEM (VT, H)  bf16  (token rows [0,V), segment rows [V,V+2))
                            wp_ref,     # VMEM (H, H)   bf16
                            bp_ref,     # VMEM (1, H)   f32
                            wc_ref,     # VMEM (H, Cp)  bf16
                            bc_ref,     # VMEM (1, Cp)  f32
                            out_ref,    # VMEM (bB, Cp) f32
                            *, seg_offset):
    bB, L = tok_ref.shape
    VT, H = emb_ref.shape

    tok = tok_ref[...]                                   # (bB, L) int32
    seg = seg_ref[...] + seg_offset                      # (bB, L) int32 -> rows of combined table
    n_valid = jnp.minimum(vlen_ref[...], L)              # (bB, 1)  gen_attention_mask length

    # Hoisted out of the per-position loop (JAX does not CSE broadcasts).
    col = jax.lax.broadcasted_iota(jnp.int32, (bB, VT), 1)

    # Fused embedding gather + attention mask, linear cost in L (VPU only,
    # vectorized over the batch tile):
    #   counts[b, v] = sum_l mask[b, l] * (onehot(tok[b, l]) + onehot(V + seg[b, l]))[v]
    counts = jnp.zeros((bB, VT), jnp.float32)
    for l in range(L):                                   # static unroll; L is a model constant
        tok_l = tok[:, l:l + 1]                          # (bB, 1)
        seg_l = seg[:, l:l + 1]                          # (bB, 1)
        valid_l = n_valid > l                            # (bB, 1) == attention_mask[:, l]
        hit = ((col == tok_l) | (col == seg_l)) & valid_l
        counts = counts + hit.astype(jnp.float32)

    # Masked mean over seq = ONE bf16 MXU matmul against the embedding table,
    # f32 accumulate; 1/valid_length applied post-dot as a per-row f32 multiply.
    inv = 1.0 / jnp.maximum(n_valid, 1).astype(jnp.float32)          # (bB, 1) f32
    pooled = jnp.dot(counts.astype(jnp.bfloat16), emb_ref[...],
                     preferred_element_type=jnp.float32) * inv       # (bB, H) f32

    # Stand-in BERT pooler: tanh(dense)  (bf16 MXU, f32 accumulate, EUP tanh).
    pooler = jnp.tanh(
        jnp.dot(pooled.astype(jnp.bfloat16), wp_ref[...],
                preferred_element_type=jnp.float32) + bp_ref[...])   # (bB, H) f32

    # Classifier: Linear(hidden_size, num_classes), lane-padded to Cp for
    # unmasked (lane-dense) stores.  dr_rate=None -> dropout branch skipped.
    out_ref[...] = (jnp.dot(pooler.astype(jnp.bfloat16), wc_ref[...],
                            preferred_element_type=jnp.float32) + bc_ref[...])


def bert_classifier_forward(token_ids, valid_length, segment_ids, params,
                            *, block_b=256):
    """JAX wrapper mirroring c_BERTClassifier.forward (dr_rate=None)."""
    tok_emb = params["tok_emb"]          # [V, H]
    seg_emb = params["seg_emb"]          # [2, H]
    wp, bp = params["wp"], params["bp"]  # [H, H], [1, H]
    wc, bc = params["wc"], params["bc"]  # [H, C], [1, C]

    B, L = token_ids.shape
    V, H = tok_emb.shape
    C = wc.shape[1]
    f32, bf16 = jnp.float32, jnp.bfloat16

    Cp = _round_up(C, 128)               # lane-dense classifier output
    VT = _round_up(V + 2, 8)             # combined token+segment table rows (sublane-aligned)

    # Batch tile: the only per-row HBM traffic left is a few int32s, so take a
    # large tile; keep >= 2 grid steps when the batch allows so the "parallel"
    # axis can shard across both v7x TensorCores.
    bB = _round_up(max(8, min(block_b, _round_up(B, 8))), 8)
    Bp = _round_up(B, bB)
    if Bp // bB == 1 and Bp >= 16:
        bB = _round_up(Bp // 2, 8)
        Bp = _round_up(B, bB)

    # Combined embedding table (token rows first, then the 2 segment rows),
    # bf16, hidden axis left at its natural size (no 4x lane padding in HBM).
    emb_p = jnp.pad(jnp.concatenate([tok_emb, seg_emb], axis=0).astype(f32),
                    ((0, VT - (V + 2)), (0, 0))).astype(bf16)            # (VT, H)

    wp_b = wp.astype(bf16)                                               # (H, H)
    bp_f = bp.astype(f32)                                                # (1, H)
    wc_b = jnp.pad(wc.astype(f32), ((0, 0), (0, Cp - C))).astype(bf16)   # (H, Cp)
    bc_f = jnp.pad(bc.astype(f32), ((0, 0), (0, Cp - C)))                # (1, Cp)

    # Only the tiny int32 id / length arrays are padded on the batch axis (the
    # old full [B, L, H] activation pad + HBM round-trip is gone).
    tok_p = jnp.pad(token_ids.astype(jnp.int32), ((0, Bp - B), (0, 0)))
    seg_p = jnp.pad(segment_ids.astype(jnp.int32), ((0, Bp - B), (0, 0)))
    vlen_p = jnp.pad(valid_length.astype(jnp.int32).reshape(B, 1),
                     ((0, Bp - B), (0, 0)))

    grid = (Bp // bB,)
    kernel = functools.partial(_bert_classifier_kernel, seg_offset=V)

    flops = 2 * Bp * (VT * H + H * H + H * Cp) + 6 * Bp * L * VT
    bytes_accessed = ((tok_p.size + seg_p.size + vlen_p.size) * 4
                      + (emb_p.size + wp_b.size + wc_b.size) * 2
                      + (bp_f.size + bc_f.size) * 4
                      + Bp * Cp * 4)

    logits_p = pl.pallas_call(
        kernel,
        out_shape=jax.ShapeDtypeStruct((Bp, Cp), f32),
        grid_spec=pl.GridSpec(
            grid=grid,
            in_specs=[
                pl.BlockSpec((bB, L), lambda i: (i, 0)),    # token_ids (batch-tiled)
                pl.BlockSpec((bB, L), lambda i: (i, 0)),    # segment_ids
                pl.BlockSpec((bB, 1), lambda i: (i, 0)),    # valid_length (vectorized mask build)
                pl.BlockSpec((VT, H), lambda i: (0, 0)),    # embedding table (resident)
                pl.BlockSpec((H, H),  lambda i: (0, 0)),    # pooler weight  (resident)
                pl.BlockSpec((1, H),  lambda i: (0, 0)),    # pooler bias
                pl.BlockSpec((H, Cp), lambda i: (0, 0)),    # classifier weight
                pl.BlockSpec((1, Cp), lambda i: (0, 0)),    # classifier bias
            ],
            out_specs=pl.BlockSpec((bB, Cp), lambda i: (i, 0)),
        ),
        compiler_params=pltpu.CompilerParams(
            dimension_semantics=("parallel",),
            vmem_limit_bytes=32 * 1024 * 1024),
        cost_estimate=pl.CostEstimate(
            flops=flops,
            transcendentals=Bp * H,
            bytes_accessed=bytes_accessed),
    )(tok_p, seg_p, vlen_p, emb_p, wp_b, bp_f, wc_b, bc_f)

    return logits_p[:B, :C]


def init_params(key, vocab=50, hidden_size=32, num_classes=10):
    k1, k2, k3, k4, k5, k6 = jax.random.split(key, 6)
    scale = 0.02
    return {
        "tok_emb": scale * jax.random.normal(k1, (vocab, hidden_size), jnp.float32),
        "seg_emb": scale * jax.random.normal(k2, (2, hidden_size), jnp.float32),
        "wp": scale * jax.random.normal(k3, (hidden_size, hidden_size), jnp.float32),
        "bp": scale * jax.random.normal(k4, (1, hidden_size), jnp.float32),
        "wc": scale * jax.random.normal(k5, (hidden_size, num_classes), jnp.float32),
        "bc": scale * jax.random.normal(k6, (1, num_classes), jnp.float32),
    }


def _reference_forward(token_ids, valid_length, segment_ids, params):
    """Pure-JAX f32 reference of the stand-in semantics (sanity check only)."""
    x = (jnp.take(params["tok_emb"], token_ids, axis=0)
         + jnp.take(params["seg_emb"], segment_ids, axis=0)).astype(jnp.float32)
    B, L, _ = x.shape
    mask = (jnp.arange(L)[None, :] < valid_length[:, None]).astype(jnp.float32)
    denom = jnp.maximum(jnp.minimum(valid_length.astype(jnp.float32), float(L)), 1.0)
    pooled = jnp.einsum("bl,blh->bh", mask, x) / denom[:, None]
    pooler = jnp.tanh(pooled @ params["wp"] + params["bp"])
    return pooler @ params["wc"] + params["bc"]


if __name__ == "__main__":
    B, L, H, C, VOCAB = 2, 8, 32, 10, 50

    key = jax.random.PRNGKey(0)
    kp, kt, ks = jax.random.split(key, 3)

    params = init_params(kp, vocab=VOCAB, hidden_size=H, num_classes=C)

    token_ids = jax.random.randint(kt, (B, L), 0, VOCAB, dtype=jnp.int32)
    segment_ids = jax.random.randint(ks, (B, L), 0, 2, dtype=jnp.int32)
    valid_length = jnp.array([5, 8], dtype=jnp.int32)

    logits = bert_classifier_forward(token_ids, valid_length, segment_ids, params)
    jax.block_until_ready(logits)

    assert logits.shape == (B, C) and logits.dtype == jnp.float32

    ref = _reference_forward(token_ids, valid_length, segment_ids, params)
    assert jnp.allclose(logits, ref, atol=1e-2, rtol=1e-2), (
        "max abs err = %f" % float(jnp.max(jnp.abs(logits - ref))))

    print("KERNEL_OK")
</pallas_src>

<mosaic_0001>
module attributes {stable_mosaic.version = 11 : i64} {
  func.func @_bert_classifier_kernel(%arg0: i32, %arg1: memref<8x8xi32, #tpu.memory_space<vmem>>, %arg2: memref<8x8xi32, #tpu.memory_space<vmem>>, %arg3: memref<8x1xi32, #tpu.memory_space<vmem>>, %arg4: memref<56x32xbf16, #tpu.memory_space<vmem>>, %arg5: memref<32x32xbf16, #tpu.memory_space<vmem>>, %arg6: memref<1x32xf32, #tpu.memory_space<vmem>>, %arg7: memref<32x128xbf16, #tpu.memory_space<vmem>>, %arg8: memref<1x128xf32, #tpu.memory_space<vmem>>, %arg9: memref<8x128xf32, #tpu.memory_space<vmem>>) attributes {dimension_semantics = [#tpu.dimension_semantics<parallel>], iteration_bounds = array<i64: 1>, scalar_prefetch = 0 : i64, scratch_operands = 0 : i64, tpu.core_type = #tpu.core_type<tc>, window_params = [{transform_indices = @transform_0, window_bounds = array<i64: 8, 8>}, {transform_indices = @transform_1, window_bounds = array<i64: 8, 8>}, {transform_indices = @transform_2, window_bounds = array<i64: 8, 1>}, {pipeline_mode = #tpu.pipeline_mode<synchronous>, transform_indices = @transform_3, window_bounds = array<i64: 56, 32>}, {pipeline_mode = #tpu.pipeline_mode<synchronous>, transform_indices = @transform_4, window_bounds = array<i64: 32, 32>}, {pipeline_mode = #tpu.pipeline_mode<synchronous>, transform_indices = @transform_5, window_bounds = array<i64: 1, 32>}, {pipeline_mode = #tpu.pipeline_mode<synchronous>, transform_indices = @transform_6, window_bounds = array<i64: 32, 128>}, {pipeline_mode = #tpu.pipeline_mode<synchronous>, transform_indices = @transform_7, window_bounds = array<i64: 1, 128>}, {transform_indices = @transform_8, window_bounds = array<i64: 8, 128>}]} {
    %c0 = arith.constant 0 : index
    %c0_0 = arith.constant 0 : index
    %0 = vector.load %arg1[%c0, %c0_0] : memref<8x8xi32, #tpu.memory_space<vmem>>, vector<8x8xi32>
    %c0_1 = arith.constant 0 : index
    %c0_2 = arith.constant 0 : index
    %1 = vector.load %arg2[%c0_1, %c0_2] : memref<8x8xi32, #tpu.memory_space<vmem>>, vector<8x8xi32>
    %c50_i32 = arith.constant 50 : i32
    %2 = vector.broadcast %c50_i32 : i32 to vector<8x8xi32>
    %3 = arith.addi %1, %2 : vector<8x8xi32>
    %c0_3 = arith.constant 0 : index
    %c0_4 = arith.constant 0 : index
    %4 = vector.load %arg3[%c0_3, %c0_4] : memref<8x1xi32, #tpu.memory_space<vmem>>, vector<8x1xi32>
    %c8_i32 = arith.constant 8 : i32
    %5 = vector.broadcast %c8_i32 : i32 to vector<8x1xi32>
    %6 = arith.minsi %4, %5 : vector<8x1xi32>
    %7 = tpu.iota {dimensions = array<i32: 1>} : vector<8x56xi32>
    %cst = arith.constant 0.000000e+00 : f32
    %8 = vector.broadcast %cst : f32 to vector<8x56xf32>
    %9 = vector.extract_strided_slice %0 {offsets = [0, 0], sizes = [8, 1], strides = [1, 1]} : vector<8x8xi32> to vector<8x1xi32>
    %10 = vector.extract_strided_slice %3 {offsets = [0, 0], sizes = [8, 1], strides = [1, 1]} : vector<8x8xi32> to vector<8x1xi32>
    %c0_i32 = arith.constant 0 : i32
    %11 = vector.broadcast %c0_i32 : i32 to vector<8x1xi32>
    %12 = arith.cmpi sgt, %6, %11 : vector<8x1xi32>
    %13 = vector.broadcast %9 : vector<8x1xi32> to vector<8x56xi32>
    %14 = arith.cmpi eq, %7, %13 : vector<8x56xi32>
    %15 = vector.broadcast %10 : vector<8x1xi32> to vector<8x56xi32>
    %16 = arith.cmpi eq, %7, %15 : vector<8x56xi32>
    %17 = arith.ori %14, %16 : vector<8x56xi1>
    %18 = vector.broadcast %12 : vector<8x1xi1> to vector<8x56xi1>
    %19 = arith.andi %17, %18 : vector<8x56xi1>
    %20 = arith.extui %19 : vector<8x56xi1> to vector<8x56xi32>
    %21 = arith.sitofp %20 : vector<8x56xi32> to vector<8x56xf32>
    %22 = arith.addf %8, %21 : vector<8x56xf32>
    %23 = vector.extract_strided_slice %0 {offsets = [0, 1], sizes = [8, 1], strides = [1, 1]} : vector<8x8xi32> to vector<8x1xi32>
    %24 = vector.extract_strided_slice %3 {offsets = [0, 1], sizes = [8, 1], strides = [1, 1]} : vector<8x8xi32> to vector<8x1xi32>
    %c1_i32 = arith.constant 1 : i32
    %25 = vector.broadcast %c1_i32 : i32 to vector<8x1xi32>
    %26 = arith.cmpi sgt, %6, %25 : vector<8x1xi32>
    %27 = vector.broadcast %23 : vector<8x1xi32> to vector<8x56xi32>
    %28 = arith.cmpi eq, %7, %27 : vector<8x56xi32>
    %29 = vector.broadcast %24 : vector<8x1xi32> to vector<8x56xi32>
    %30 = arith.cmpi eq, %7, %29 : vector<8x56xi32>
    %31 = arith.ori %28, %30 : vector<8x56xi1>
    %32 = vector.broadcast %26 : vector<8x1xi1> to vector<8x56xi1>
    %33 = arith.andi %31, %32 : vector<8x56xi1>
    %34 = arith.extui %33 : vector<8x56xi1> to vector<8x56xi32>
    %35 = arith.sitofp %34 : vector<8x56xi32> to vector<8x56xf32>
    %36 = arith.addf %22, %35 : vector<8x56xf32>
    %37 = vector.extract_strided_slice %0 {offsets = [0, 2], sizes = [8, 1], strides = [1, 1]} : vector<8x8xi32> to vector<8x1xi32>
    %38 = vector.extract_strided_slice %3 {offsets = [0, 2], sizes = [8, 1], strides = [1, 1]} : vector<8x8xi32> to vector<8x1xi32>
    %c2_i32 = arith.constant 2 : i32
    %39 = vector.broadcast %c2_i32 : i32 to vector<8x1xi32>
    %40 = arith.cmpi sgt, %6, %39 : vector<8x1xi32>
    %41 = vector.broadcast %37 : vector<8x1xi32> to vector<8x56xi32>
    %42 = arith.cmpi eq, %7, %41 : vector<8x56xi32>
    %43 = vector.broadcast %38 : vector<8x1xi32> to vector<8x56xi32>
    %44 = arith.cmpi eq, %7, %43 : vector<8x56xi32>
    %45 = arith.ori %42, %44 : vector<8x56xi1>
    %46 = vector.broadcast %40 : vector<8x1xi1> to vector<8x56xi1>
    %47 = arith.andi %45, %46 : vector<8x56xi1>
    %48 = arith.extui %47 : vector<8x56xi1> to vector<8x56xi32>
    %49 = arith.sitofp %48 : vector<8x56xi32> to vector<8x56xf32>
    %50 = arith.addf %36, %49 : vector<8x56xf32>
    %51 = vector.extract_strided_slice %0 {offsets = [0, 3], sizes = [8, 1], strides = [1, 1]} : vector<8x8xi32> to vector<8x1xi32>
    %52 = vector.extract_strided_slice %3 {offsets = [0, 3], sizes = [8, 1], strides = [1, 1]} : vector<8x8xi32> to vector<8x1xi32>
    %c3_i32 = arith.constant 3 : i32
    %53 = vector.broadcast %c3_i32 : i32 to vector<8x1xi32>
    %54 = arith.cmpi sgt, %6, %53 : vector<8x1xi32>
    %55 = vector.broadcast %51 : vector<8x1xi32> to vector<8x56xi32>
    %56 = arith.cmpi eq, %7, %55 : vector<8x56xi32>
    %57 = vector.broadcast %52 : vector<8x1xi32> to vector<8x56xi32>
    %58 = arith.cmpi eq, %7, %57 : vector<8x56xi32>
    %59 = arith.ori %56, %58 : vector<8x56xi1>
    %60 = vector.broadcast %54 : vector<8x1xi1> to vector<8x56xi1>
    %61 = arith.andi %59, %60 : vector<8x56xi1>
    %62 = arith.extui %61 : vector<8x56xi1> to vector<8x56xi32>
    %63 = arith.sitofp %62 : vector<8x56xi32> to vector<8x56xf32>
    %64 = arith.addf %50, %63 : vector<8x56xf32>
    %65 = vector.extract_strided_slice %0 {offsets = [0, 4], sizes = [8, 1], strides = [1, 1]} : vector<8x8xi32> to vector<8x1xi32>
    %66 = vector.extract_strided_slice %3 {offsets = [0, 4], sizes = [8, 1], strides = [1, 1]} : vector<8x8xi32> to vector<8x1xi32>
    %c4_i32 = arith.constant 4 : i32
    %67 = vector.broadcast %c4_i32 : i32 to vector<8x1xi32>
    %68 = arith.cmpi sgt, %6, %67 : vector<8x1xi32>
    %69 = vector.broadcast %65 : vector<8x1xi32> to vector<8x56xi32>
    %70 = arith.cmpi eq, %7, %69 : vector<8x56xi32>
    %71 = vector.broadcast %66 : vector<8x1xi32> to vector<8x56xi32>
    %72 = arith.cmpi eq, %7, %71 : vector<8x56xi32>
    %73 = arith.ori %70, %72 : vector<8x56xi1>
    %74 = vector.broadcast %68 : vector<8x1xi1> to vector<8x56xi1>
    %75 = arith.andi %73, %74 : vector<8x56xi1>
    %76 = arith.extui %75 : vector<8x56xi1> to vector<8x56xi32>
    %77 = arith.sitofp %76 : vector<8x56xi32> to vector<8x56xf32>
    %78 = arith.addf %64, %77 : vector<8x56xf32>
    %79 = vector.extract_strided_slice %0 {offsets = [0, 5], sizes = [8, 1], strides = [1, 1]} : vector<8x8xi32> to vector<8x1xi32>
    %80 = vector.extract_strided_slice %3 {offsets = [0, 5], sizes = [8, 1], strides = [1, 1]} : vector<8x8xi32> to vector<8x1xi32>
    %c5_i32 = arith.constant 5 : i32
    %81 = vector.broadcast %c5_i32 : i32 to vector<8x1xi32>
    %82 = arith.cmpi sgt, %6, %81 : vector<8x1xi32>
    %83 = vector.broadcast %79 : vector<8x1xi32> to vector<8x56xi32>
    %84 = arith.cmpi eq, %7, %83 : vector<8x56xi32>
    %85 = vector.broadcast %80 : vector<8x1xi32> to vector<8x56xi32>
    %86 = arith.cmpi eq, %7, %85 : vector<8x56xi32>
    %87 = arith.ori %84, %86 : vector<8x56xi1>
    %88 = vector.broadcast %82 : vector<8x1xi1> to vector<8x56xi1>
    %89 = arith.andi %87, %88 : vector<8x56xi1>
    %90 = arith.extui %89 : vector<8x56xi1> to vector<8x56xi32>
    %91 = arith.sitofp %90 : vector<8x56xi32> to vector<8x56xf32>
    %92 = arith.addf %78, %91 : vector<8x56xf32>
    %93 = vector.extract_strided_slice %0 {offsets = [0, 6], sizes = [8, 1], strides = [1, 1]} : vector<8x8xi32> to vector<8x1xi32>
    %94 = vector.extract_strided_slice %3 {offsets = [0, 6], sizes = [8, 1], strides = [1, 1]} : vector<8x8xi32> to vector<8x1xi32>
    %c6_i32 = arith.constant 6 : i32
    %95 = vector.broadcast %c6_i32 : i32 to vector<8x1xi32>
    %96 = arith.cmpi sgt, %6, %95 : vector<8x1xi32>
    %97 = vector.broadcast %93 : vector<8x1xi32> to vector<8x56xi32>
    %98 = arith.cmpi eq, %7, %97 : vector<8x56xi32>
    %99 = vector.broadcast %94 : vector<8x1xi32> to vector<8x56xi32>
    %100 = arith.cmpi eq, %7, %99 : vector<8x56xi32>
    %101 = arith.ori %98, %100 : vector<8x56xi1>
    %102 = vector.broadcast %96 : vector<8x1xi1> to vector<8x56xi1>
    %103 = arith.andi %101, %102 : vector<8x56xi1>
    %104 = arith.extui %103 : vector<8x56xi1> to vector<8x56xi32>
    %105 = arith.sitofp %104 : vector<8x56xi32> to vector<8x56xf32>
    %106 = arith.addf %92, %105 : vector<8x56xf32>
    %107 = vector.extract_strided_slice %0 {offsets = [0, 7], sizes = [8, 1], strides = [1, 1]} : vector<8x8xi32> to vector<8x1xi32>
    %108 = vector.extract_strided_slice %3 {offsets = [0, 7], sizes = [8, 1], strides = [1, 1]} : vector<8x8xi32> to vector<8x1xi32>
    %c7_i32 = arith.constant 7 : i32
    %109 = vector.broadcast %c7_i32 : i32 to vector<8x1xi32>
    %110 = arith.cmpi sgt, %6, %109 : vector<8x1xi32>
    %111 = vector.broadcast %107 : vector<8x1xi32> to vector<8x56xi32>
    %112 = arith.cmpi eq, %7, %111 : vector<8x56xi32>
    %113 = vector.broadcast %108 : vector<8x1xi32> to vector<8x56xi32>
    %114 = arith.cmpi eq, %7, %113 : vector<8x56xi32>
    %115 = arith.ori %112, %114 : vector<8x56xi1>
    %116 = vector.broadcast %110 : vector<8x1xi1> to vector<8x56xi1>
    %117 = arith.andi %115, %116 : vector<8x56xi1>
    %118 = arith.extui %117 : vector<8x56xi1> to vector<8x56xi32>
    %119 = arith.sitofp %118 : vector<8x56xi32> to vector<8x56xf32>
    %120 = arith.addf %106, %119 : vector<8x56xf32>
    %c1_i32_5 = arith.constant 1 : i32
    %121 = vector.broadcast %c1_i32_5 : i32 to vector<8x1xi32>
    %122 = arith.maxsi %6, %121 : vector<8x1xi32>
    %123 = arith.sitofp %122 : vector<8x1xi32> to vector<8x1xf32>
    %cst_6 = arith.constant 1.000000e+00 : f32
    %124 = vector.broadcast %cst_6 : f32 to vector<8x1xf32>
    %125 = arith.divf %124, %123 : vector<8x1xf32>
    %126 = arith.truncf %120 : vector<8x56xf32> to vector<8x56xbf16>
    %c0_7 = arith.constant 0 : index
    %c0_8 = arith.constant 0 : index
    %127 = vector.load %arg4[%c0_7, %c0_8] : memref<56x32xbf16, #tpu.memory_space<vmem>>, vector<56x32xbf16>
    %cst_9 = arith.constant dense<0.000000e+00> : vector<8x32xf32>
    %128 = tpu.matmul %126, %127, %cst_9 {dimension_numbers = #tpu.dot_dimension_numbers<[1], [0], [0], [1], [0, 0, 1, 1], [], []>} : vector<8x56xbf16>, vector<56x32xbf16>, vector<8x32xf32> -> vector<8x32xf32>
    %129 = vector.broadcast %125 : vector<8x1xf32> to vector<8x32xf32>
    %130 = arith.mulf %128, %129 : vector<8x32xf32>
    %131 = arith.truncf %130 : vector<8x32xf32> to vector<8x32xbf16>
    %c0_10 = arith.constant 0 : index
    %c0_11 = arith.constant 0 : index
    %132 = vector.load %arg5[%c0_10, %c0_11] : memref<32x32xbf16, #tpu.memory_space<vmem>>, vector<32x32xbf16>
    %cst_12 = arith.constant dense<0.000000e+00> : vector<8x32xf32>
    %133 = tpu.matmul %131, %132, %cst_12 {dimension_numbers = #tpu.dot_dimension_numbers<[1], [0], [0], [1], [0, 0, 1, 1], [], []>} : vector<8x32xbf16>, vector<32x32xbf16>, vector<8x32xf32> -> vector<8x32xf32>
    %c0_13 = arith.constant 0 : index
    %c0_14 = arith.constant 0 : index
    %134 = vector.load %arg6[%c0_13, %c0_14] : memref<1x32xf32, #tpu.memory_space<vmem>>, vector<1x32xf32>
    %135 = vector.broadcast %134 : vector<1x32xf32> to vector<8x32xf32>
    %136 = arith.addf %133, %135 : vector<8x32xf32>
    %137 = math.tanh %136 : vector<8x32xf32>
    %138 = arith.truncf %137 : vector<8x32xf32> to vector<8x32xbf16>
    %c0_15 = arith.constant 0 : index
    %c0_16 = arith.constant 0 : index
    %139 = vector.load %arg7[%c0_15, %c0_16] : memref<32x128xbf16, #tpu.memory_space<vmem>>, vector<32x128xbf16>
    %cst_17 = arith.constant dense<0.000000e+00> : vector<8x128xf32>
    %140 = tpu.matmul %138, %139, %cst_17 {dimension_numbers = #tpu.dot_dimension_numbers<[1], [0], [0], [1], [0, 0, 1, 1], [], []>} : vector<8x32xbf16>, vector<32x128xbf16>, vector<8x128xf32> -> vector<8x128xf32>
    %c0_18 = arith.constant 0 : index
    %c0_19 = arith.constant 0 : index
    %141 = vector.load %arg8[%c0_18, %c0_19] : memref<1x128xf32, #tpu.memory_space<vmem>>, vector<1x128xf32>
    %142 = vector.broadcast %141 : vector<1x128xf32> to vector<8x128xf32>
    %143 = arith.addf %140, %142 : vector<8x128xf32>
    %c0_20 = arith.constant 0 : index
    %c0_21 = arith.constant 0 : index
    %144 = vector.load %arg9[%c0_20, %c0_21] : memref<8x128xf32, #tpu.memory_space<vmem>>, vector<8x128xf32>
    tpu.vector_store %arg9[%c0_20, %c0_21], %143 {strides = array<i32>} : memref<8x128xf32, #tpu.memory_space<vmem>>, vector<8x128xf32>,
    return
  }
  func.func @transform_0(%arg0: i32) -> (i32, i32) {
    %c0_i32 = arith.constant 0 : i32
    %c0_i32_0 = arith.constant 0 : i32
    return %arg0, %c0_i32 : i32, i32
  }
  func.func @transform_1(%arg0: i32) -> (i32, i32) {
    %c0_i32 = arith.constant 0 : i32
    %c0_i32_0 = arith.constant 0 : i32
    return %arg0, %c0_i32 : i32, i32
  }
  func.func @transform_2(%arg0: i32) -> (i32, i32) {
    %c0_i32 = arith.constant 0 : i32
    %c0_i32_0 = arith.constant 0 : i32
    return %arg0, %c0_i32 : i32, i32
  }
  func.func @transform_3(%arg0: i32) -> (i32, i32) {
    %c0_i32 = arith.constant 0 : i32
    %c0_i32_0 = arith.constant 0 : i32
    %c0_i32_1 = arith.constant 0 : i32
    return %c0_i32, %c0_i32_0 : i32, i32
  }
  func.func @transform_4(%arg0: i32) -> (i32, i32) {
    %c0_i32 = arith.constant 0 : i32
    %c0_i32_0 = arith.constant 0 : i32
    %c0_i32_1 = arith.constant 0 : i32
    return %c0_i32, %c0_i32_0 : i32, i32
  }
  func.func @transform_5(%arg0: i32) -> (i32, i32) {
    %c0_i32 = arith.constant 0 : i32
    %c0_i32_0 = arith.constant 0 : i32
    %c0_i32_1 = arith.constant 0 : i32
    return %c0_i32, %c0_i32_0 : i32, i32
  }
  func.func @transform_6(%arg0: i32) -> (i32, i32) {
    %c0_i32 = arith.constant 0 : i32
    %c0_i32_0 = arith.constant 0 : i32
    %c0_i32_1 = arith.constant 0 : i32
    return %c0_i32, %c0_i32_0 : i32, i32
  }
  func.func @transform_7(%arg0: i32) -> (i32, i32) {
    %c0_i32 = arith.constant 0 : i32
    %c0_i32_0 = arith.constant 0 : i32
    %c0_i32_1 = arith.constant 0 : i32
    return %c0_i32, %c0_i32_0 : i32, i32
  }
  func.func @transform_8(%arg0: i32) -> (i32, i32) {
    %c0_i32 = arith.constant 0 : i32
    %c0_i32_0 = arith.constant 0 : i32
    return %arg0, %c0_i32 : i32, i32
  }
}

</mosaic_0001>

<llo_original>
// kernel: tpu_custom_call.1
$region0: #{tpu_custom_call.1}
  #allocation0 [shape = 'u32[]', space=smem, size = 0x4, offset = 0x4, fixed_abs, tag = 'smem constant byte address 0x4 - core index']
  #allocation1 [shape = 'u32[144,128]{1,0:T(1,128)}', space=vmem, size = 0x12000, scoped, tag = 'internal scratch']
  %s0 = inlined_call_operand.vmem [shape: s32[8,8], index: 0, kind: input, shape index: {}]
  %s1 = inlined_call_operand.vmem [shape: s32[8,8], index: 1, kind: input, shape index: {}]
  %s2 = inlined_call_operand.vmem [shape: s32[8,1], index: 2, kind: input, shape index: {}]
  %s3 = inlined_call_operand.vmem [shape: bf16[56,32], index: 3, kind: input, shape index: {}]
  %s4 = inlined_call_operand.vmem [shape: bf16[32,32], index: 4, kind: input, shape index: {}]
  %s5 = inlined_call_operand.vmem [shape: f32[1,32], index: 5, kind: input, shape index: {}]
  %s6 = inlined_call_operand.vmem [shape: bf16[32,128], index: 6, kind: input, shape index: {}]
  %s7 = inlined_call_operand.vmem [shape: f32[1,128], index: 7, kind: input, shape index: {}]
  %s8 = inlined_call_operand.hbm [shape: f32[8,128], index: 8, kind: output, shape index: {}]
  %s9 = sld [smem:[#allocation0]]
  $region42: #{tpu_custom_call.1} parent=0
    _
  %s11 = ssub.s32 1, %s9
  %s12 = scalar_select 0, %s11, %s9
  $region1: #{tpu_custom_call.1} parent=0
    #allocation2 [shape = 'u8[4096]{0}', space=vmem, size = 0x1000, scoped, tag = 'output window, operand 0, single buffered']
    #allocation3 [shape = 's32[1]{0}', space=sflag, size = 0x4, scoped, tag = 'scoped memory for tpu_custom_call.1']
    %13 = vsyncpa [#allocation3], 0
    // Predicated region
    $region2: #{tpu_custom_call.1} parent=1 // pred_check
      _
    $region3: #{tpu_custom_call.1} parent=1 // pred_check_branch
      %15 = sbr.rel (0) target = $region5
    $region4: #{tpu_custom_call.1} parent=1 // pred_region
      _
    $region5: #{tpu_custom_call.1} parent=1 // pred_fallthru
      _
    // Predicated region
    $region6: #{tpu_custom_call.1} parent=1 // pred_check
      _
    $region7: #{tpu_custom_call.1} parent=1 // pred_check_branch
      %17 = sbr.rel (0) target = $region9
    $region8: #{tpu_custom_call.1} parent=1 // pred_region
      _
    $region9: #{tpu_custom_call.1} parent=1 // pred_fallthru
      _
    // Predicated region
    $region10: #{tpu_custom_call.1} parent=1 // pred_check
      _
    $region11: #{tpu_custom_call.1} parent=1 // pred_check_branch
      %19 = sbr.rel (0) target = $region13
    $region12: #{tpu_custom_call.1} parent=1 // pred_region
      _
    $region13: #{tpu_custom_call.1} parent=1 // pred_fallthru
      _
    // Predicated region
    $region14: #{tpu_custom_call.1} parent=1 // pred_check
      _
    $region15: #{tpu_custom_call.1} parent=1 // pred_check_branch
      %21 = sbr.rel (0) target = $region17
    $region16: #{tpu_custom_call.1} parent=1 // pred_region
      _
    $region17: #{tpu_custom_call.1} parent=1 // pred_fallthru
      _
    // Predicated region
    $region18: #{tpu_custom_call.1} parent=1 // pred_check
      _
    $region19: #{tpu_custom_call.1} parent=1 // pred_check_branch
      %23 = sbr.rel (0) target = $region21
    $region20: #{tpu_custom_call.1} parent=1 // pred_region
      _
    $region21: #{tpu_custom_call.1} parent=1 // pred_fallthru
      _
    // Predicated region
    $region22: #{tpu_custom_call.1} parent=1 // pred_check
      _
    $region23: #{tpu_custom_call.1} parent=1 // pred_check_branch
      %25 = sbr.rel (0) target = $region25
    $region24: #{tpu_custom_call.1} parent=1 // pred_region
      _
    $region25: #{tpu_custom_call.1} parent=1 // pred_fallthru
      _
    // Predicated region
    $region26: #{tpu_custom_call.1} parent=1 // pred_check
      _
    $region27: #{tpu_custom_call.1} parent=1 // pred_check_branch
      %27 = sbr.rel (0) target = $region29
    $region28: #{tpu_custom_call.1} parent=1 // pred_region
      _
    $region29: #{tpu_custom_call.1} parent=1 // pred_fallthru
      _
    // Predicated region
    $region30: #{tpu_custom_call.1} parent=1 // pred_check
      _
    $region31: #{tpu_custom_call.1} parent=1 // pred_check_branch
      %29 = sbr.rel (0) target = $region33
    $region32: #{tpu_custom_call.1} parent=1 // pred_region
      _
    $region33: #{tpu_custom_call.1} parent=1 // pred_fallthru
      _
    %v31 = vld [vmem:[%s0] sm:$0xff]
    %v32 = vld [vmem:[%s1] sm:$0xff]
    %v33 = vadd.s32 %v32, 50
    %v34 = vld [vmem:[%s2] sm:$0xff]
    %vm35 = vcmp.lt.s32.totalorder %v34, 8
    %v36 = vsel %vm35, %v34, 8
    %v37 = vlaneseq
    %v38 = vand.u32 %v37, 127
    %vm39 = vcmp.gt.s32.totalorder %v36, 0
    %40 = vset.pattern.permute.xlu0 0
    %41 = vperm.xlu0 %40, %v31
    %v42 = vpop.permute.xlu0 %41
    %vm43 = vcmp.eq.s32.totalorder %v38, %v42
    %44 = vset.pattern.permute.xlu0 0
    %45 = vperm.xlu0 %44, %v33
    %v46 = vpop.permute.xlu0 %45
    %vm47 = vcmp.eq.s32.totalorder %v38, %v46
    %vm48 = vmor %vm43, %vm47
    %v49 = vsel %vm39, 1, 0
    %50 = vset.pattern.permute.xlu0 0
    %51 = vperm.xlu0 %50, %v49
    %v52 = vpop.permute.xlu0 %51
    %vm53 = vcmp.eq.s32.totalorder %v52, 1
    %vm54 = vmand %vm48, %vm53
    %v55 = vsel %vm54, 1, 0
    %v56 = vcvt.s32.f32 %v55
    %v57 = vadd.f32 %v56, 0.0
    %vm58 = vcmp.gt.s32.totalorder %v36, 1
    %59 = vset.pattern.permute.xlu0 1
    %60 = vperm.xlu0 %59, %v31
    %v61 = vpop.permute.xlu0 %60
    %vm62 = vcmp.eq.s32.totalorder %v38, %v61
    %63 = vset.pattern.permute.xlu0 1
    %64 = vperm.xlu0 %63, %v33
    %v65 = vpop.permute.xlu0 %64
    %vm66 = vcmp.eq.s32.totalorder %v38, %v65
    %vm67 = vmor %vm62, %vm66
    %v68 = vsel %vm58, 1, 0
    %69 = vset.pattern.permute.xlu0 0
    %70 = vperm.xlu0 %69, %v68
    %v71 = vpop.permute.xlu0 %70
    %vm72 = vcmp.eq.s32.totalorder %v71, 1
    %vm73 = vmand %vm67, %vm72
    %v74 = vsel %vm73, 1, 0
    %v75 = vcvt.s32.f32 %v74
    %v76 = vadd.f32 %v57, %v75
    %vm77 = vcmp.gt.s32.totalorder %v36, 2
    %78 = vset.pattern.permute.xlu0 2
    %79 = vperm.xlu0 %78, %v31
    %v80 = vpop.permute.xlu0 %79
    %vm81 = vcmp.eq.s32.totalorder %v38, %v80
    %82 = vset.pattern.permute.xlu0 2
    %83 = vperm.xlu0 %82, %v33
    %v84 = vpop.permute.xlu0 %83
    %vm85 = vcmp.eq.s32.totalorder %v38, %v84
    %vm86 = vmor %vm81, %vm85
    %v87 = vsel %vm77, 1, 0
    %88 = vset.pattern.permute.xlu0 0
    %89 = vperm.xlu0 %88, %v87
    %v90 = vpop.permute.xlu0 %89
    %vm91 = vcmp.eq.s32.totalorder %v90, 1
    %vm92 = vmand %vm86, %vm91
    %v93 = vsel %vm92, 1, 0
    %v94 = vcvt.s32.f32 %v93
    %v95 = vadd.f32 %v76, %v94
    %vm96 = vcmp.gt.s32.totalorder %v36, 3
    %97 = vset.pattern.permute.xlu0 3
    %98 = vperm.xlu0 %97, %v31
    %v99 = vpop.permute.xlu0 %98
    %vm100 = vcmp.eq.s32.totalorder %v38, %v99
    %101 = vset.pattern.permute.xlu0 3
    %102 = vperm.xlu0 %101, %v33
    %v103 = vpop.permute.xlu0 %102
    %vm104 = vcmp.eq.s32.totalorder %v38, %v103
    %vm105 = vmor %vm100, %vm104
    %v106 = vsel %vm96, 1, 0
    %107 = vset.pattern.permute.xlu0 0
    %108 = vperm.xlu0 %107, %v106
    %v109 = vpop.permute.xlu0 %108
    %vm110 = vcmp.eq.s32.totalorder %v109, 1
    %vm111 = vmand %vm105, %vm110
    %v112 = vsel %vm111, 1, 0
    %v113 = vcvt.s32.f32 %v112
    %v114 = vadd.f32 %v95, %v113
    %vm115 = vcmp.gt.s32.totalorder %v36, 4
    %116 = vset.pattern.permute.xlu0 4
    %117 = vperm.xlu0 %116, %v31
    %v118 = vpop.permute.xlu0 %117
    %vm119 = vcmp.eq.s32.totalorder %v38, %v118
    %120 = vset.pattern.permute.xlu0 4
    %121 = vperm.xlu0 %120, %v33
    %v122 = vpop.permute.xlu0 %121
    %vm123 = vcmp.eq.s32.totalorder %v38, %v122
    %vm124 = vmor %vm119, %vm123
    %v125 = vsel %vm115, 1, 0
    %126 = vset.pattern.permute.xlu0 0
    %127 = vperm.xlu0 %126, %v125
    %v128 = vpop.permute.xlu0 %127
    %vm129 = vcmp.eq.s32.totalorder %v128, 1
    %vm130 = vmand %vm124, %vm129
    %v131 = vsel %vm130, 1, 0
    %v132 = vcvt.s32.f32 %v131
    %v133 = vadd.f32 %v114, %v132
    %vm134 = vcmp.gt.s32.totalorder %v36, 5
    %135 = vset.pattern.permute.xlu0 5
    %136 = vperm.xlu0 %135, %v31
    %v137 = vpop.permute.xlu0 %136
    %vm138 = vcmp.eq.s32.totalorder %v38, %v137
    %139 = vset.pattern.permute.xlu0 5
    %140 = vperm.xlu0 %139, %v33
    %v141 = vpop.permute.xlu0 %140
    %vm142 = vcmp.eq.s32.totalorder %v38, %v141
    %vm143 = vmor %vm138, %vm142
    %v144 = vsel %vm134, 1, 0
    %145 = vset.pattern.permute.xlu0 0
    %146 = vperm.xlu0 %145, %v144
    %v147 = vpop.permute.xlu0 %146
    %vm148 = vcmp.eq.s32.totalorder %v147, 1
    %vm149 = vmand %vm143, %vm148
    %v150 = vsel %vm149, 1, 0
    %v151 = vcvt.s32.f32 %v150
    %v152 = vadd.f32 %v133, %v151
    %vm153 = vcmp.gt.s32.totalorder %v36, 6
    %154 = vset.pattern.permute.xlu0 6
    %155 = vperm.xlu0 %154, %v31
    %v156 = vpop.permute.xlu0 %155
    %vm157 = vcmp.eq.s32.totalorder %v38, %v156
    %158 = vset.pattern.permute.xlu0 6
    %159 = vperm.xlu0 %158, %v33
    %v160 = vpop.permute.xlu0 %159
    %vm161 = vcmp.eq.s32.totalorder %v38, %v160
    %vm162 = vmor %vm157, %vm161
    %v163 = vsel %vm153, 1, 0
    %164 = vset.pattern.permute.xlu0 0
    %165 = vperm.xlu0 %164, %v163
    %v166 = vpop.permute.xlu0 %165
    %vm167 = vcmp.eq.s32.totalorder %v166, 1
    %vm168 = vmand %vm162, %vm167
    %v169 = vsel %vm168, 1, 0
    %v170 = vcvt.s32.f32 %v169
    %v171 = vadd.f32 %v152, %v170
    %vm172 = vcmp.gt.s32.totalorder %v36, 7
    %173 = vset.pattern.permute.xlu0 7
    %174 = vperm.xlu0 %173, %v31
    %v175 = vpop.permute.xlu0 %174
    %vm176 = vcmp.eq.s32.totalorder %v38, %v175
    %177 = vset.pattern.permute.xlu0 7
    %178 = vperm.xlu0 %177, %v33
    %v179 = vpop.permute.xlu0 %178
    %vm180 = vcmp.eq.s32.totalorder %v38, %v179
    %vm181 = vmor %vm176, %vm180
    %v182 = vsel %vm172, 1, 0
    %183 = vset.pattern.permute.xlu0 0
    %184 = vperm.xlu0 %183, %v182
    %v185 = vpop.permute.xlu0 %184
    %vm186 = vcmp.eq.s32.totalorder %v185, 1
    %vm187 = vmand %vm181, %vm186
    %v188 = vsel %vm187, 1, 0
    %v189 = vcvt.s32.f32 %v188
    %v190 = vadd.f32 %v171, %v189
    %vm191 = vcmp.gt.s32.totalorder %v36, 1
    %v192 = vsel %vm191, %v36, 1
    %v193 = vcvt.s32.f32 %v192
    %v194 = vrcp.pop %v193
    %v195 = vmul.f32 1.0, %v194
    %v196 = vpack.c.bf16 %v190, %v190
    %v197 = vld [vmem:[%s3] sm:$0xf]
    %v198 = vld [vmem:[%s3 + $0x4] sm:$0xf]
    %v199 = vld [vmem:[%s3 + $0x8] sm:$0xf]
    %v200 = vld [vmem:[%s3 + $0xc] sm:$0xf]
    %v201 = vld [vmem:[%s3 + $0x10] sm:$0xf]
    %v202 = vld [vmem:[%s3 + $0x14] sm:$0xf]
    %v203 = vld [vmem:[%s3 + $0x18] sm:$0xf]
    %v211 = vunpack.c.l.b16 %v197
    %v212 = vunpack.c.l.b16 %v198
    %v213 = vunpack.c.l.b16 %v199
    %v214 = vunpack.c.l.b16 %v200
    %v215 = vunpack.c.l.b16 %v201
    %v216 = vunpack.c.l.b16 %v202
    %v217 = vunpack.c.l.b16 %v203
    %v218 = vpack.c.b16 %v212, %v211
    %v219 = vpack.c.b16 %v214, %v213
    %v220 = vpack.c.b16 %v216, %v215
    %v221 = vpack.c.b16 %v217, %v217
    %vm225 = vcmask 457728
    %v227 = vsel %vm225, %v196, 0
    %vm229 = vcmask 1043456
    %v231 = vsel %vm229, %v221, 0
    %233 = vmatprep.subr.bf16.mxu0 0
    %234 = vmatpush1.bf16.msra.mxu0 %v218
    %235 = vmatprep.subr.bf16.mxu0 0
    %236 = vmatpush1.bf16.msra.mxu0 %v219
    %237 = vmatprep.subr.bf16.mxu0 0
    %238 = vmatpush1.bf16.msra.mxu0 %v220
    %239 = vmatprep.subr.bf16.mxu0 0
    %240 = vmatpush1.bf16.msra.mxu0 %v231
    %241 = vmatprep.subr.bf16.mxu0 0
    %242 = vmatpush1.bf16.msra.mxu0 0
    %243 = vmatprep.subr.bf16.mxu0 0
    %244 = vmatpush1.bf16.msra.mxu0 0
    %245 = vmatprep.subr.bf16.mxu0 0
    %246 = vmatpush1.bf16.msra.mxu0 0
    %247 = vmatprep.subr.bf16.mxu0 0
    %248 = vmatpush1.bf16.msra.mxu0 0
    %249 = vmatprep.subr.bf16.mxu0 0
    %250 = vmatpush1.bf16.msra.mxu0 0
    %251 = vmatprep.subr.bf16.mxu0 0
    %252 = vmatpush1.bf16.msra.mxu0 0
    %253 = vmatprep.subr.bf16.mxu0 0
    %254 = vmatpush1.bf16.msra.mxu0 0
    %255 = vmatprep.subr.bf16.mxu0 0
    %256 = vmatpush1.bf16.msra.mxu0 0
    %257 = vmatprep.subr.bf16.mxu0 0
    %258 = vmatpush1.bf16.msra.mxu0 0
    %259 = vmatprep.subr.bf16.mxu0 0
    %260 = vmatpush1.bf16.msra.mxu0 0
    %261 = vmatprep.subr.bf16.mxu0 0
    %262 = vmatpush1.bf16.msra.mxu0 0
    %263 = vmatprep.subr.bf16.mxu0 0
    %264 = vmatpush1.bf16.msra.mxu0 0
    %265 = vmatprep.mubr.bf16.mxu0 0
    %266 = vmatmul.mubr.bf16.gmra.mrb[0].mxu0 %v227
    %v267 = vpop.f32.mrb[0].mxu0
    %v268 = vadd.f32 0.0, %v267
    %v269 = vpop.f32.mrb[0].mxu0
    %v270 = vpop.f32.mrb[0].mxu0
    %v271 = vpop.f32.mrb[0].mxu0
    %272 = vdwg.mxu0
    %274 = vset.pattern.permute.xlu0 0
    %275 = vperm.xlu0 %274, %v195
    %v276 = vpop.permute.xlu0 %275
    %v278 = vmul.f32 %v268, %v276
    %v279 = vpack.c.bf16 %v278, %v278
    %v280 = vld [vmem:[%s4] sm:$0xf]
    %v281 = vld [vmem:[%s4 + $0x4] sm:$0xf]
    %v282 = vld [vmem:[%s4 + $0x8] sm:$0xf]
    %v283 = vld [vmem:[%s4 + $0xc] sm:$0xf]
    %v284 = vld [vmem:[%s5] sm:$0x1]
    %v286 = vlaneseq
    %v287 = vshrl.u32 %v286, 7
    %v288 = vsub.s32 0, %v287
    %v289 = vrot.slane %v284, %v288
    %v295 = vunpack.c.l.b16 %v280
    %v296 = vunpack.c.l.b16 %v281
    %v297 = vunpack.c.l.b16 %v282
    %v298 = vunpack.c.l.b16 %v283
    %v299 = vpack.c.b16 %v296, %v295
    %v300 = vpack.c.b16 %v298, %v297
    %vm303 = vcmask 261120
    %v305 = vsel %vm303, %v279, 0
    %307 = vmatprep.subr.bf16.mxu0 0
    %308 = vmatpush1.bf16.msra.mxu0 %v299
    %309 = vmatprep.subr.bf16.mxu0 0
    %310 = vmatpush1.bf16.msra.mxu0 %v300
    %311 = vmatprep.subr.bf16.mxu0 0
    %312 = vmatpush1.bf16.msra.mxu0 0
    %313 = vmatprep.subr.bf16.mxu0 0
    %314 = vmatpush1.bf16.msra.mxu0 0
    %315 = vmatprep.subr.bf16.mxu0 0
    %316 = vmatpush1.bf16.msra.mxu0 0
    %317 = vmatprep.subr.bf16.mxu0 0
    %318 = vmatpush1.bf16.msra.mxu0 0
    %319 = vmatprep.subr.bf16.mxu0 0
    %320 = vmatpush1.bf16.msra.mxu0 0
    %321 = vmatprep.subr.bf16.mxu0 0
    %322 = vmatpush1.bf16.msra.mxu0 0
    %323 = vmatprep.subr.bf16.mxu0 0
    %324 = vmatpush1.bf16.msra.mxu0 0
    %325 = vmatprep.subr.bf16.mxu0 0
    %326 = vmatpush1.bf16.msra.mxu0 0
    %327 = vmatprep.subr.bf16.mxu0 0
    %328 = vmatpush1.bf16.msra.mxu0 0
    %329 = vmatprep.subr.bf16.mxu0 0
    %330 = vmatpush1.bf16.msra.mxu0 0
    %331 = vmatprep.subr.bf16.mxu0 0
    %332 = vmatpush1.bf16.msra.mxu0 0
    %333 = vmatprep.subr.bf16.mxu0 0
    %334 = vmatpush1.bf16.msra.mxu0 0
    %335 = vmatprep.subr.bf16.mxu0 0
    %336 = vmatpush1.bf16.msra.mxu0 0
    %337 = vmatprep.subr.bf16.mxu0 0
    %338 = vmatpush1.bf16.msra.mxu0 0
    %339 = vmatprep.mubr.bf16.mxu0 0
    %340 = vmatmul.mubr.bf16.gmra.mrb[0].mxu0 %v305
    %v341 = vpop.f32.mrb[0].mxu0
    %v342 = vadd.f32 %v289, %v341
    %v343 = vpop.f32.mrb[0].mxu0
    %v344 = vpop.f32.mrb[0].mxu0
    %v345 = vpop.f32.mrb[0].mxu0
    %346 = vdwg.mxu0
    %v347 = vtanh.pop %v342
    %v348 = vpack.c.bf16 %v347, %v347
    %v349 = vld [vmem:[%s6] sm:$0xf]
    %v350 = vld [vmem:[%s6 + $0x4] sm:$0xf]
    %v351 = vld [vmem:[%s6 + $0x8] sm:$0xf]
    %v352 = vld [vmem:[%s6 + $0xc] sm:$0xf]
    %v353 = vld [vmem:[%s7] sm:$0x1]
    %v355 = vlaneseq
    %v356 = vshrl.u32 %v355, 7
    %v357 = vsub.s32 0, %v356
    %v358 = vrot.slane %v353, %v357
    %v364 = vunpack.c.l.b16 %v349
    %v365 = vunpack.c.l.b16 %v350
    %v366 = vunpack.c.l.b16 %v351
    %v367 = vunpack.c.l.b16 %v352
    %v368 = vpack.c.b16 %v365, %v364
    %v369 = vpack.c.b16 %v367, %v366
    %v373 = vsel %vm303, %v348, 0
    %375 = vmatprep.subr.bf16.mxu0 0
    %376 = vmatpush1.bf16.msra.mxu0 %v368
    %377 = vmatprep.subr.bf16.mxu0 0
    %378 = vmatpush1.bf16.msra.mxu0 %v369
    %379 = vmatprep.subr.bf16.mxu0 0
    %380 = vmatpush1.bf16.msra.mxu0 0
    %381 = vmatprep.subr.bf16.mxu0 0
    %382 = vmatpush1.bf16.msra.mxu0 0
    %383 = vmatprep.subr.bf16.mxu0 0
    %384 = vmatpush1.bf16.msra.mxu0 0
    %385 = vmatprep.subr.bf16.mxu0 0
    %386 = vmatpush1.bf16.msra.mxu0 0
    %387 = vmatprep.subr.bf16.mxu0 0
    %388 = vmatpush1.bf16.msra.mxu0 0
    %389 = vmatprep.subr.bf16.mxu0 0
    %390 = vmatpush1.bf16.msra.mxu0 0
    %391 = vmatprep.subr.bf16.mxu0 0
    %392 = vmatpush1.bf16.msra.mxu0 0
    %393 = vmatprep.subr.bf16.mxu0 0
    %394 = vmatpush1.bf16.msra.mxu0 0
    %395 = vmatprep.subr.bf16.mxu0 0
    %396 = vmatpush1.bf16.msra.mxu0 0
    %397 = vmatprep.subr.bf16.mxu0 0
    %398 = vmatpush1.bf16.msra.mxu0 0
    %399 = vmatprep.subr.bf16.mxu0 0
    %400 = vmatpush1.bf16.msra.mxu0 0
    %401 = vmatprep.subr.bf16.mxu0 0
    %402 = vmatpush1.bf16.msra.mxu0 0
    %403 = vmatprep.subr.bf16.mxu0 0
    %404 = vmatpush1.bf16.msra.mxu0 0
    %405 = vmatprep.subr.bf16.mxu0 0
    %406 = vmatpush1.bf16.msra.mxu0 0
    %407 = vmatprep.mubr.bf16.mxu0 0
    %408 = vmatmul.mubr.bf16.gmra.mrb[0].mxu0 %v373
    %v409 = vpop.f32.mrb[0].mxu0
    %v410 = vadd.f32 %v358, %v409
    %v411 = vpop.f32.mrb[0].mxu0
    %v412 = vpop.f32.mrb[0].mxu0
    %v413 = vpop.f32.mrb[0].mxu0
    %414 = vdwg.mxu0
    %415 = vst [vmem:[#allocation2] sm:$0xff] %v410
    // Predicated region
    $region34: #{tpu_custom_call.1} parent=1 // pred_check
      _
    $region35: #{tpu_custom_call.1} parent=1 // pred_check_branch
      %417 = sbr.rel (0) target = $region37
    $region36: #{tpu_custom_call.1} parent=1 // pred_region
      %s419 = ssub.s32 128, 128
      %420 = vsyncadd [#allocation3], %s419
      %s422 = sshll.u32 [#allocation2], 4
      %s423 = int_to_ptr.vmem [resolvable:$true] %s422
      %425 = dma.vmem_to_hbm [thread:$0]  %s423, 128, %s8, [#allocation3]
    $region37: #{tpu_custom_call.1} parent=1 // pred_fallthru
      _
    // Predicated region
    $region38: #{tpu_custom_call.1} parent=1 // pred_check
      _
    $region39: #{tpu_custom_call.1} parent=1 // pred_check_branch
      %427 = sbr.rel (0) target = $region41
    $region40: #{tpu_custom_call.1} parent=1 // pred_region
      %428 = dma.done [#allocation3], 128
    $region41: #{tpu_custom_call.1} parent=1 // pred_fallthru
      _
    %429 = vsyncpa [#allocation3], 1

</llo_original>
